<compile_context>
chip_gen: v6e
topology: v6e:2x2x1
jax: 0.10.0
libtpu: 0.0.40
codegen_flags: <defaults>
</compile_context>

<pallas_src>
import functools

import jax
import jax.numpy as jnp
from jax import lax
from jax.experimental import pallas as pl
from jax.experimental.pallas import tpu as pltpu

NEG_SLOPE = 0.2
BN_EPS = 1e-5
LANE = 128
SUBLANE = 8
VMEM_LIMIT_BYTES = 48 * 1024 * 1024
VMEM_BUDGET_BYTES = 40 * 1024 * 1024  # leave headroom under the explicit limit


def _leaky(v):
    # LeakyReLU(0.2): max(v, 0.2*v) is exact for slope < 1 (single vmul + vmax).
    return jnp.maximum(v, NEG_SLOPE * v)


def _classifier_kernel(layers_num, apply_bn, b_real,
                       x_ref, w_in_ref, b_in_ref,
                       w_mid_ref, b_mid_ref,
                       w_out_ref, b_out_ref,
                       o_ref, acc_ref):
    k = pl.program_id(0)

    @pl.when(k == 0)
    def _init():
        # Seed the accumulator with the input-layer bias (broadcast over rows) so the
        # finalize step does not need a separate bias add.
        acc_ref[...] = jnp.broadcast_to(b_in_ref[...], acc_ref.shape)

    # K-tiled first matmul: bf16 x bf16 -> f32 accumulate on the MXU.
    acc_ref[...] += jnp.dot(x_ref[...], w_in_ref[...],
                            preferred_element_type=jnp.float32)

    @pl.when(k == pl.num_programs(0) - 1)
    def _finalize():
        h = _leaky(acc_ref[...])

        # Hoist shared-weight loads out of the unrolled layer loop
        # (JAX does not CSE broadcast_in_dim / repeated loads).
        w_mid = w_mid_ref[...]          # bf16, gamma already folded in
        b_mid = b_mid_ref[...]          # f32, beta already folded in

        row_mask = None
        if apply_bn:
            b_pad = h.shape[0]
            if b_pad != b_real:
                # Mask padded batch rows out of the BN statistics (hoisted: built once).
                row_mask = (lax.broadcasted_iota(jnp.int32, h.shape, 0)
                            < b_real).astype(jnp.float32)
            inv_b = 1.0 / b_real

        for _ in range(layers_num):
            if apply_bn:
                if row_mask is None:
                    mean = jnp.mean(h, axis=0, keepdims=True)
                    c = h - mean
                    var = jnp.mean(c * c, axis=0, keepdims=True)
                else:
                    mean = jnp.sum(h * row_mask, axis=0, keepdims=True) * inv_b
                    c = h - mean
                    var = jnp.sum(c * c * row_mask, axis=0, keepdims=True) * inv_b
                # gamma/beta folded into (w_mid, b_mid) in the wrapper.
                h = c * lax.rsqrt(var + BN_EPS)
            h = _leaky(jnp.dot(h.astype(jnp.bfloat16), w_mid,
                               preferred_element_type=jnp.float32) + b_mid)

        out = _leaky(jnp.dot(h.astype(jnp.bfloat16), w_out_ref[...],
                             preferred_element_type=jnp.float32) + b_out_ref[...])
        o_ref[...] = out.astype(o_ref.dtype)


def _pad_axis(a, axis, multiple):
    pad = (-a.shape[axis]) % multiple
    if pad == 0:
        return a
    widths = [(0, 0)] * a.ndim
    widths[axis] = (0, pad)
    return jnp.pad(a, widths)


def _pick_k_tile(B_pad, K_pad, L_pad, A_pad):
    """Largest K tile (1024/512/256/128) dividing K_pad that fits the VMEM budget."""
    resident = (B_pad * L_pad * 4            # f32 accumulator
                + B_pad * A_pad * 4 * 2      # output block (+ buffer slack)
                + L_pad * L_pad * 2          # w_mid (bf16)
                + L_pad * A_pad * 2          # w_out (bf16)
                + 3 * L_pad * 4 + A_pad * 4)  # biases
    for tk in (1024, 512, 256, 128):
        if K_pad % tk:
            continue
        streamed = 2 * (B_pad * tk * 2 + tk * L_pad * 2)   # double-buffered bf16 tiles
        if resident + streamed <= VMEM_BUDGET_BYTES:
            return tk
    return 128


def celeba_attr_classifier(x, params, *, layers_num=1, apply_bn=True):
    """x: (B, input_dim) float32. params: dict of weights in PyTorch layouts."""
    B = x.shape[0]
    attributes_num = params["w_out"].shape[0]

    # Fold the (batch-independent) BN affine into the shared mid Linear:
    #   ((h-m)*rs*gamma + beta) @ W^T + b == (h-m)*rs @ (gamma[:,None]*W^T) + (b + beta@W^T)
    w_mid_t = params["w_mid"].T                         # (latent, latent), in -> out
    if apply_bn:
        w_mid_eff = params["gamma"][:, None] * w_mid_t
        b_mid_eff = params["b_mid"] + params["beta"] @ w_mid_t
    else:
        w_mid_eff = w_mid_t
        b_mid_eff = params["b_mid"]

    # Pad lane dims to 128 / batch to 8; cast matmul operands to bf16 once here.
    x_p = _pad_axis(_pad_axis(x, 1, LANE), 0, SUBLANE).astype(jnp.bfloat16)
    w_in = _pad_axis(_pad_axis(params["w_in"].T, 0, LANE), 1, LANE).astype(jnp.bfloat16)
    b_in = _pad_axis(params["b_in"][None, :], 1, LANE).astype(jnp.float32)
    w_mid = _pad_axis(_pad_axis(w_mid_eff, 0, LANE), 1, LANE).astype(jnp.bfloat16)
    b_mid = _pad_axis(b_mid_eff[None, :], 1, LANE).astype(jnp.float32)
    w_out = _pad_axis(_pad_axis(params["w_out"].T, 0, LANE), 1, LANE).astype(jnp.bfloat16)
    b_out = _pad_axis(params["b_out"][None, :], 1, LANE).astype(jnp.float32)

    B_pad, K_pad = x_p.shape
    L_pad = w_in.shape[1]
    A_pad = w_out.shape[1]

    tk = _pick_k_tile(B_pad, K_pad, L_pad, A_pad)
    nk = K_pad // tk

    kernel = functools.partial(_classifier_kernel, layers_num, apply_bn, B)

    out_padded = pl.pallas_call(
        kernel,
        out_shape=jax.ShapeDtypeStruct((B_pad, A_pad), jnp.float32),
        grid=(nk,),
        in_specs=[
            pl.BlockSpec((B_pad, tk), lambda k: (0, k)),      # x       (K-tiled)
            pl.BlockSpec((tk, L_pad), lambda k: (k, 0)),      # W_in    (K-tiled)
            pl.BlockSpec((1, L_pad), lambda k: (0, 0)),       # b_in
            pl.BlockSpec((L_pad, L_pad), lambda k: (0, 0)),   # W_mid (gamma folded)
            pl.BlockSpec((1, L_pad), lambda k: (0, 0)),       # b_mid (beta folded)
            pl.BlockSpec((L_pad, A_pad), lambda k: (0, 0)),   # W_out
            pl.BlockSpec((1, A_pad), lambda k: (0, 0)),       # b_out
        ],
        out_specs=pl.BlockSpec((B_pad, A_pad), lambda k: (0, 0)),
        scratch_shapes=[pltpu.VMEM((B_pad, L_pad), jnp.float32)],
        compiler_params=pltpu.CompilerParams(
            dimension_semantics=("arbitrary",),
            vmem_limit_bytes=VMEM_LIMIT_BYTES,
        ),
    )(x_p, w_in, b_in, w_mid, b_mid, w_out, b_out)

    return out_padded[:B, :attributes_num]


def init_params(key, input_dim, attributes_num, latent_dim):
    """Deterministic synthetic init mimicking PyTorch Linear default (U[-1/sqrt(fan_in), +])."""
    ks = jax.random.split(key, 8)

    def lin(kw, kb, fan_in, fan_out):
        bound = 1.0 / jnp.sqrt(fan_in)
        w = jax.random.uniform(kw, (fan_out, fan_in), jnp.float32, -bound, bound)
        b = jax.random.uniform(kb, (fan_out,), jnp.float32, -bound, bound)
        return w, b

    w_in, b_in = lin(ks[0], ks[1], input_dim, latent_dim)
    w_mid, b_mid = lin(ks[2], ks[3], latent_dim, latent_dim)
    w_out, b_out = lin(ks[4], ks[5], latent_dim, attributes_num)
    gamma = 1.0 + 0.1 * jax.random.normal(ks[6], (latent_dim,), jnp.float32)
    beta = 0.1 * jax.random.normal(ks[7], (latent_dim,), jnp.float32)
    return dict(w_in=w_in, b_in=b_in, gamma=gamma, beta=beta,
                w_mid=w_mid, b_mid=b_mid, w_out=w_out, b_out=b_out)


def reference_forward(x, p, *, layers_num, apply_bn):
    """Pure-JAX f32 reference mirroring the PyTorch forward (training-mode BN)."""
    h = _leaky(x @ p["w_in"].T + p["b_in"])
    for _ in range(layers_num):
        if apply_bn:
            mean = h.mean(0, keepdims=True)
            c = h - mean
            var = (c * c).mean(0, keepdims=True)
            h = c * lax.rsqrt(var + BN_EPS) * p["gamma"] + p["beta"]
        h = _leaky(h @ p["w_mid"].T + p["b_mid"])
    return _leaky(h @ p["w_out"].T + p["b_out"])


def matched_reference(x, p, *, layers_num, apply_bn):
    """Pure-JAX reference replicating the kernel's exact numerics
    (folded gamma/beta, bf16 dot operands, f32 accumulation / BN stats)."""
    bf = lambda a: a.astype(jnp.bfloat16)
    inv_b = 1.0 / x.shape[0]
    w_in_t, w_mid_t, w_out_t = p["w_in"].T, p["w_mid"].T, p["w_out"].T
    if apply_bn:
        w_mid_eff = p["gamma"][:, None] * w_mid_t
        b_mid_eff = p["b_mid"] + p["beta"] @ w_mid_t
    else:
        w_mid_eff, b_mid_eff = w_mid_t, p["b_mid"]
    h = _leaky(jnp.dot(bf(x), bf(w_in_t), preferred_element_type=jnp.float32) + p["b_in"])
    for _ in range(layers_num):
        if apply_bn:
            mean = h.sum(0, keepdims=True) * inv_b
            c = h - mean
            var = (c * c).sum(0, keepdims=True) * inv_b
            h = c * lax.rsqrt(var + BN_EPS)
        h = _leaky(jnp.dot(bf(h), bf(w_mid_eff), preferred_element_type=jnp.float32)
                   + b_mid_eff)
    return _leaky(jnp.dot(bf(h), bf(w_out_t), preferred_element_type=jnp.float32)
                  + p["b_out"])


if __name__ == "__main__":
    # Small shapes; B=6 deliberately not a multiple of 8 to exercise the masked-BN path.
    B, INPUT_DIM, LATENT_DIM, ATTR_NUM, LAYERS = 6, 32, 32, 16, 2

    key = jax.random.PRNGKey(0)
    kx, kp = jax.random.split(key)
    x = jax.random.normal(kx, (B, INPUT_DIM), jnp.float32)
    params = init_params(kp, INPUT_DIM, ATTR_NUM, LATENT_DIM)

    out = celeba_attr_classifier(x, params, layers_num=LAYERS, apply_bn=True)
    out = jax.block_until_ready(out)
    assert out.shape == (B, ATTR_NUM)

    # Tight check vs a reference with identical numerics (validates padding, masking,
    # K-grid accumulation, bias-seeded accumulator and the gamma/beta folding plumbing).
    ref_m = matched_reference(x, params, layers_num=LAYERS, apply_bn=True)
    assert jnp.allclose(out, ref_m, atol=1e-3, rtol=1e-3), "mismatch vs matched reference"

    # Loose semantic check vs the full-f32 PyTorch-style reference
    # (bf16 matmul operands introduce ~1e-2 relative error).
    ref_f32 = reference_forward(x, params, layers_num=LAYERS, apply_bn=True)
    max_err = float(jnp.max(jnp.abs(out - ref_f32)))
    assert max_err < 0.15, f"too far from f32 reference: {max_err}"

    # Also exercise the no-BN variant of the module.
    out_nobn = jax.block_until_ready(
        celeba_attr_classifier(x, params, layers_num=LAYERS, apply_bn=False))
    ref_nobn = matched_reference(x, params, layers_num=LAYERS, apply_bn=False)
    assert jnp.allclose(out_nobn, ref_nobn, atol=1e-3, rtol=1e-3), "no-BN mismatch"

    print("KERNEL_OK")
</pallas_src>

<mosaic_0001>
module attributes {stable_mosaic.version = 11 : i64} {
  func.func @_classifier_kernel(%arg0: i32, %arg1: memref<8x128xbf16, #tpu.memory_space<vmem>>, %arg2: memref<128x128xbf16, #tpu.memory_space<vmem>>, %arg3: memref<1x128xf32, #tpu.memory_space<vmem>>, %arg4: memref<128x128xbf16, #tpu.memory_space<vmem>>, %arg5: memref<1x128xf32, #tpu.memory_space<vmem>>, %arg6: memref<128x128xbf16, #tpu.memory_space<vmem>>, %arg7: memref<1x128xf32, #tpu.memory_space<vmem>>, %arg8: memref<8x128xf32, #tpu.memory_space<vmem>>, %arg9: memref<8x128xf32, #tpu.memory_space<vmem>>) attributes {dimension_semantics = [#tpu.dimension_semantics<arbitrary>], iteration_bounds = array<i64: 1>, scalar_prefetch = 0 : i64, scratch_operands = 1 : i64, tpu.core_type = #tpu.core_type<tc>, window_params = [{transform_indices = @transform_0, window_bounds = array<i64: 8, 128>}, {transform_indices = @transform_1, window_bounds = array<i64: 128, 128>}, {pipeline_mode = #tpu.pipeline_mode<synchronous>, transform_indices = @transform_2, window_bounds = array<i64: 1, 128>}, {pipeline_mode = #tpu.pipeline_mode<synchronous>, transform_indices = @transform_3, window_bounds = array<i64: 128, 128>}, {pipeline_mode = #tpu.pipeline_mode<synchronous>, transform_indices = @transform_4, window_bounds = array<i64: 1, 128>}, {pipeline_mode = #tpu.pipeline_mode<synchronous>, transform_indices = @transform_5, window_bounds = array<i64: 128, 128>}, {pipeline_mode = #tpu.pipeline_mode<synchronous>, transform_indices = @transform_6, window_bounds = array<i64: 1, 128>}, {pipeline_mode = #tpu.pipeline_mode<synchronous>, transform_indices = @transform_7, window_bounds = array<i64: 8, 128>}]} {
    %c0_i32 = arith.constant 0 : i32
    %0 = arith.cmpi eq, %arg0, %c0_i32 : i32
    %1 = arith.extui %0 : i1 to i32
    %c0_i32_0 = arith.constant 0 : i32
    %2 = arith.cmpi ne, %1, %c0_i32_0 : i32
    scf.if %2 {
      %c0_10 = arith.constant 0 : index
      %c0_11 = arith.constant 0 : index
      %12 = vector.load %arg3[%c0_10, %c0_11] : memref<1x128xf32, #tpu.memory_space<vmem>>, vector<1x128xf32>
      %13 = vector.shape_cast %12 : vector<1x128xf32> to vector<1x128xf32>
      %14 = vector.broadcast %13 : vector<1x128xf32> to vector<8x128xf32>
      %c0_12 = arith.constant 0 : index
      %c0_13 = arith.constant 0 : index
      %15 = vector.load %arg9[%c0_12, %c0_13] : memref<8x128xf32, #tpu.memory_space<vmem>>, vector<8x128xf32>
      tpu.vector_store %arg9[%c0_12, %c0_13], %14 {strides = array<i32>} : memref<8x128xf32, #tpu.memory_space<vmem>>, vector<8x128xf32>,
    } else {
    }
    %c0 = arith.constant 0 : index
    %c0_1 = arith.constant 0 : index
    %3 = vector.load %arg9[%c0, %c0_1] : memref<8x128xf32, #tpu.memory_space<vmem>>, vector<8x128xf32>
    %c0_2 = arith.constant 0 : index
    %c0_3 = arith.constant 0 : index
    %4 = vector.load %arg1[%c0_2, %c0_3] : memref<8x128xbf16, #tpu.memory_space<vmem>>, vector<8x128xbf16>
    %c0_4 = arith.constant 0 : index
    %c0_5 = arith.constant 0 : index
    %5 = vector.load %arg2[%c0_4, %c0_5] : memref<128x128xbf16, #tpu.memory_space<vmem>>, vector<128x128xbf16>
    %cst = arith.constant dense<0.000000e+00> : vector<8x128xf32>
    %6 = tpu.matmul %4, %5, %cst {dimension_numbers = #tpu.dot_dimension_numbers<[1], [0], [0], [1], [0, 0, 1, 1], [], []>} : vector<8x128xbf16>, vector<128x128xbf16>, vector<8x128xf32> -> vector<8x128xf32>
    %7 = arith.addf %3, %6 : vector<8x128xf32>
    %c0_6 = arith.constant 0 : index
    %c0_7 = arith.constant 0 : index
    %8 = vector.load %arg9[%c0_6, %c0_7] : memref<8x128xf32, #tpu.memory_space<vmem>>, vector<8x128xf32>
    tpu.vector_store %arg9[%c0_6, %c0_7], %7 {strides = array<i32>} : memref<8x128xf32, #tpu.memory_space<vmem>>, vector<8x128xf32>,
    %c0_i32_8 = arith.constant 0 : i32
    %9 = arith.cmpi eq, %arg0, %c0_i32_8 : i32
    %10 = arith.extui %9 : i1 to i32
    %c0_i32_9 = arith.constant 0 : i32
    %11 = arith.cmpi ne, %10, %c0_i32_9 : i32
    scf.if %11 {
      %c0_10 = arith.constant 0 : index
      %c0_11 = arith.constant 0 : index
      %12 = vector.load %arg9[%c0_10, %c0_11] : memref<8x128xf32, #tpu.memory_space<vmem>>, vector<8x128xf32>
      %cst_12 = arith.constant 2.000000e-01 : f32
      %13 = vector.broadcast %cst_12 : f32 to vector<8x128xf32>
      %14 = arith.mulf %13, %12 : vector<8x128xf32>
      %15 = arith.maximumf %12, %14 : vector<8x128xf32>
      %c0_13 = arith.constant 0 : index
      %c0_14 = arith.constant 0 : index
      %16 = vector.load %arg4[%c0_13, %c0_14] : memref<128x128xbf16, #tpu.memory_space<vmem>>, vector<128x128xbf16>
      %c0_15 = arith.constant 0 : index
      %c0_16 = arith.constant 0 : index
      %17 = vector.load %arg5[%c0_15, %c0_16] : memref<1x128xf32, #tpu.memory_space<vmem>>, vector<1x128xf32>
      %18 = tpu.iota {dimensions = array<i32: 0>} : vector<8x128xi32>
      %c6_i32 = arith.constant 6 : i32
      %19 = vector.broadcast %c6_i32 : i32 to vector<8x128xi32>
      %20 = arith.cmpi slt, %18, %19 : vector<8x128xi32>
      %21 = arith.extui %20 : vector<8x128xi1> to vector<8x128xi32>
      %22 = arith.sitofp %21 : vector<8x128xi32> to vector<8x128xf32>
      %23 = arith.mulf %15, %22 : vector<8x128xf32>
      %cst_17 = arith.constant dense<0.000000e+00> : vector<128xf32>
      %24 = vector.multi_reduction <add>, %23, %cst_17 [0] : vector<8x128xf32> to vector<128xf32>
      %25 = vector.shape_cast %24 : vector<128xf32> to vector<1x128xf32>
      %cst_18 = arith.constant 0.166666672 : f32
      %26 = vector.broadcast %cst_18 : f32 to vector<1x128xf32>
      %27 = arith.mulf %25, %26 : vector<1x128xf32>
      %28 = vector.broadcast %27 : vector<1x128xf32> to vector<8x128xf32>
      %29 = arith.subf %15, %28 : vector<8x128xf32>
      %30 = arith.mulf %29, %29 : vector<8x128xf32>
      %31 = arith.mulf %30, %22 : vector<8x128xf32>
      %cst_19 = arith.constant dense<0.000000e+00> : vector<128xf32>
      %32 = vector.multi_reduction <add>, %31, %cst_19 [0] : vector<8x128xf32> to vector<128xf32>
      %33 = vector.shape_cast %32 : vector<128xf32> to vector<1x128xf32>
      %cst_20 = arith.constant 0.166666672 : f32
      %34 = vector.broadcast %cst_20 : f32 to vector<1x128xf32>
      %35 = arith.mulf %33, %34 : vector<1x128xf32>
      %cst_21 = arith.constant 9.99999974E-6 : f32
      %36 = vector.broadcast %cst_21 : f32 to vector<1x128xf32>
      %37 = arith.addf %35, %36 : vector<1x128xf32>
      %38 = math.rsqrt %37 : vector<1x128xf32>
      %39 = vector.broadcast %38 : vector<1x128xf32> to vector<8x128xf32>
      %40 = arith.mulf %29, %39 : vector<8x128xf32>
      %41 = arith.truncf %40 : vector<8x128xf32> to vector<8x128xbf16>
      %cst_22 = arith.constant dense<0.000000e+00> : vector<8x128xf32>
      %42 = tpu.matmul %41, %16, %cst_22 {dimension_numbers = #tpu.dot_dimension_numbers<[1], [0], [0], [1], [0, 0, 1, 1], [], []>} : vector<8x128xbf16>, vector<128x128xbf16>, vector<8x128xf32> -> vector<8x128xf32>
      %43 = vector.broadcast %17 : vector<1x128xf32> to vector<8x128xf32>
      %44 = arith.addf %42, %43 : vector<8x128xf32>
      %cst_23 = arith.constant 2.000000e-01 : f32
      %45 = vector.broadcast %cst_23 : f32 to vector<8x128xf32>
      %46 = arith.mulf %45, %44 : vector<8x128xf32>
      %47 = arith.maximumf %44, %46 : vector<8x128xf32>
      %48 = arith.mulf %47, %22 : vector<8x128xf32>
      %cst_24 = arith.constant dense<0.000000e+00> : vector<128xf32>
      %49 = vector.multi_reduction <add>, %48, %cst_24 [0] : vector<8x128xf32> to vector<128xf32>
      %50 = vector.shape_cast %49 : vector<128xf32> to vector<1x128xf32>
      %cst_25 = arith.constant 0.166666672 : f32
      %51 = vector.broadcast %cst_25 : f32 to vector<1x128xf32>
      %52 = arith.mulf %50, %51 : vector<1x128xf32>
      %53 = vector.broadcast %52 : vector<1x128xf32> to vector<8x128xf32>
      %54 = arith.subf %47, %53 : vector<8x128xf32>
      %55 = arith.mulf %54, %54 : vector<8x128xf32>
      %56 = arith.mulf %55, %22 : vector<8x128xf32>
      %cst_26 = arith.constant dense<0.000000e+00> : vector<128xf32>
      %57 = vector.multi_reduction <add>, %56, %cst_26 [0] : vector<8x128xf32> to vector<128xf32>
      %58 = vector.shape_cast %57 : vector<128xf32> to vector<1x128xf32>
      %cst_27 = arith.constant 0.166666672 : f32
      %59 = vector.broadcast %cst_27 : f32 to vector<1x128xf32>
      %60 = arith.mulf %58, %59 : vector<1x128xf32>
      %cst_28 = arith.constant 9.99999974E-6 : f32
      %61 = vector.broadcast %cst_28 : f32 to vector<1x128xf32>
      %62 = arith.addf %60, %61 : vector<1x128xf32>
      %63 = math.rsqrt %62 : vector<1x128xf32>
      %64 = vector.broadcast %63 : vector<1x128xf32> to vector<8x128xf32>
      %65 = arith.mulf %54, %64 : vector<8x128xf32>
      %66 = arith.truncf %65 : vector<8x128xf32> to vector<8x128xbf16>
      %cst_29 = arith.constant dense<0.000000e+00> : vector<8x128xf32>
      %67 = tpu.matmul %66, %16, %cst_29 {dimension_numbers = #tpu.dot_dimension_numbers<[1], [0], [0], [1], [0, 0, 1, 1], [], []>} : vector<8x128xbf16>, vector<128x128xbf16>, vector<8x128xf32> -> vector<8x128xf32>
      %68 = vector.broadcast %17 : vector<1x128xf32> to vector<8x128xf32>
      %69 = arith.addf %67, %68 : vector<8x128xf32>
      %cst_30 = arith.constant 2.000000e-01 : f32
      %70 = vector.broadcast %cst_30 : f32 to vector<8x128xf32>
      %71 = arith.mulf %70, %69 : vector<8x128xf32>
      %72 = arith.maximumf %69, %71 : vector<8x128xf32>
      %73 = arith.truncf %72 : vector<8x128xf32> to vector<8x128xbf16>
      %c0_31 = arith.constant 0 : index
      %c0_32 = arith.constant 0 : index
      %74 = vector.load %arg6[%c0_31, %c0_32] : memref<128x128xbf16, #tpu.memory_space<vmem>>, vector<128x128xbf16>
      %cst_33 = arith.constant dense<0.000000e+00> : vector<8x128xf32>
      %75 = tpu.matmul %73, %74, %cst_33 {dimension_numbers = #tpu.dot_dimension_numbers<[1], [0], [0], [1], [0, 0, 1, 1], [], []>} : vector<8x128xbf16>, vector<128x128xbf16>, vector<8x128xf32> -> vector<8x128xf32>
      %c0_34 = arith.constant 0 : index
      %c0_35 = arith.constant 0 : index
      %76 = vector.load %arg7[%c0_34, %c0_35] : memref<1x128xf32, #tpu.memory_space<vmem>>, vector<1x128xf32>
      %77 = vector.broadcast %76 : vector<1x128xf32> to vector<8x128xf32>
      %78 = arith.addf %75, %77 : vector<8x128xf32>
      %cst_36 = arith.constant 2.000000e-01 : f32
      %79 = vector.broadcast %cst_36 : f32 to vector<8x128xf32>
      %80 = arith.mulf %79, %78 : vector<8x128xf32>
      %81 = arith.maximumf %78, %80 : vector<8x128xf32>
      %c0_37 = arith.constant 0 : index
      %c0_38 = arith.constant 0 : index
      %82 = vector.load %arg8[%c0_37, %c0_38] : memref<8x128xf32, #tpu.memory_space<vmem>>, vector<8x128xf32>
      tpu.vector_store %arg8[%c0_37, %c0_38], %81 {strides = array<i32>} : memref<8x128xf32, #tpu.memory_space<vmem>>, vector<8x128xf32>,
    } else {
    }
    return
  }
  func.func @transform_0(%arg0: i32) -> (i32, i32) {
    %c0_i32 = arith.constant 0 : i32
    %c0_i32_0 = arith.constant 0 : i32
    return %c0_i32, %arg0 : i32, i32
  }
  func.func @transform_1(%arg0: i32) -> (i32, i32) {
    %c0_i32 = arith.constant 0 : i32
    %c0_i32_0 = arith.constant 0 : i32
    return %arg0, %c0_i32 : i32, i32
  }
  func.func @transform_2(%arg0: i32) -> (i32, i32) {
    %c0_i32 = arith.constant 0 : i32
    %c0_i32_0 = arith.constant 0 : i32
    %c0_i32_1 = arith.constant 0 : i32
    return %c0_i32, %c0_i32_0 : i32, i32
  }
  func.func @transform_3(%arg0: i32) -> (i32, i32) {
    %c0_i32 = arith.constant 0 : i32
    %c0_i32_0 = arith.constant 0 : i32
    %c0_i32_1 = arith.constant 0 : i32
    return %c0_i32, %c0_i32_0 : i32, i32
  }
  func.func @transform_4(%arg0: i32) -> (i32, i32) {
    %c0_i32 = arith.constant 0 : i32
    %c0_i32_0 = arith.constant 0 : i32
    %c0_i32_1 = arith.constant 0 : i32
    return %c0_i32, %c0_i32_0 : i32, i32
  }
  func.func @transform_5(%arg0: i32) -> (i32, i32) {
    %c0_i32 = arith.constant 0 : i32
    %c0_i32_0 = arith.constant 0 : i32
    %c0_i32_1 = arith.constant 0 : i32
    return %c0_i32, %c0_i32_0 : i32, i32
  }
  func.func @transform_6(%arg0: i32) -> (i32, i32) {
    %c0_i32 = arith.constant 0 : i32
    %c0_i32_0 = arith.constant 0 : i32
    %c0_i32_1 = arith.constant 0 : i32
    return %c0_i32, %c0_i32_0 : i32, i32
  }
  func.func @transform_7(%arg0: i32) -> (i32, i32) {
    %c0_i32 = arith.constant 0 : i32
    %c0_i32_0 = arith.constant 0 : i32
    %c0_i32_1 = arith.constant 0 : i32
    return %c0_i32, %c0_i32_0 : i32, i32
  }
}

</mosaic_0001>

<llo_original>
// kernel: tpu_custom_call.1
$region0: #{tpu_custom_call.1}
  #allocation0 [shape = 'u32[]', space=smem, size = 0x4, offset = 0x4, fixed_abs, tag = 'smem constant byte address 0x4 - core index']
  #allocation1 [shape = 'u32[144,128]{1,0:T(1,128)}', space=vmem, size = 0x12000, scoped, tag = 'internal scratch']
  #allocation2 [shape = 'f32[8,128]{1,0:T(8,128)}', space=vmem, size = 0x1000, scoped, tag = 'scratch operand']
  %s0 = inlined_call_operand.hbm [shape: bf16[8,128], index: 0, kind: input, shape index: {}]
  %s1 = inlined_call_operand.hbm [shape: bf16[128,128], index: 1, kind: input, shape index: {}]
  %s2 = inlined_call_operand.vmem [shape: f32[1,128], index: 2, kind: input, shape index: {}]
  %s3 = inlined_call_operand.hbm [shape: bf16[128,128], index: 3, kind: input, shape index: {}]
  %s4 = inlined_call_operand.vmem [shape: f32[1,128], index: 4, kind: input, shape index: {}]
  %s5 = inlined_call_operand.hbm [shape: bf16[128,128], index: 5, kind: input, shape index: {}]
  %s6 = inlined_call_operand.vmem [shape: f32[1,128], index: 6, kind: input, shape index: {}]
  %s7 = inlined_call_operand.hbm [shape: f32[8,128], index: 7, kind: output, shape index: {}]
  %s8 = sld [smem:[#allocation0]]
  $region62: #{tpu_custom_call.1} parent=0
    _
  %s10 = ssub.s32 1, %s8
  %s11 = scalar_select 0, %s10, %s8
  $region1: #{tpu_custom_call.1} parent=0
    #allocation3 [shape = 'u8[2048]{0}', space=vmem, size = 0x800, scoped, tag = 'input window, operand 0, single buffered']
    #allocation4 [shape = 's32[1]{0}', space=sflag, size = 0x4, scoped, tag = 'scoped memory for tpu_custom_call.1']
    #allocation5 [shape = 's32[1]{0}', space=sflag, size = 0x4, scoped, tag = 'scoped memory for tpu_custom_call.1']
    #allocation6 [shape = 'u8[32768]{0}', space=vmem, size = 0x8000, scoped, tag = 'input window, operand 1, single buffered']
    #allocation7 [shape = 's32[1]{0}', space=sflag, size = 0x4, scoped, tag = 'scoped memory for tpu_custom_call.1']
    #allocation8 [shape = 'u8[32768]{0}', space=vmem, size = 0x8000, scoped, tag = 'input window, operand 3, single buffered']
    #allocation9 [shape = 'u8[32768]{0}', space=vmem, size = 0x8000, scoped, tag = 'input window, operand 5, single buffered']
    #allocation10 [shape = 's32[1]{0}', space=sflag, size = 0x4, scoped, tag = 'scoped memory for tpu_custom_call.1']
    #allocation11 [shape = 'u8[4096]{0}', space=vmem, size = 0x1000, scoped, tag = 'output window, operand 0, single buffered']
    %12 = vsyncpa [#allocation4], 0
    %13 = vsyncpa [#allocation7], 0
    %14 = vsyncpa [#allocation10], 0
    %15 = vsyncpa [#allocation5], 0
    // Predicated region
    $region2: #{tpu_custom_call.1} parent=1 // pred_check
      _
    $region3: #{tpu_custom_call.1} parent=1 // pred_check_branch
      %17 = sbr.rel (0) target = $region5
    $region4: #{tpu_custom_call.1} parent=1 // pred_region
      %s19 = ssub.s32 64, 64
      %20 = vsyncadd [#allocation4], %s19
      %s22 = sshll.u32 [#allocation3], 4
      %s23 = int_to_ptr.vmem [resolvable:$true] %s22
      %25 = dma.hbm_to_vmem [thread:$0]  %s0, 64, %s23, [#allocation4]
    $region5: #{tpu_custom_call.1} parent=1 // pred_fallthru
      _
    // Predicated region
    $region6: #{tpu_custom_call.1} parent=1 // pred_check
      _
    $region7: #{tpu_custom_call.1} parent=1 // pred_check_branch
      %27 = sbr.rel (0) target = $region9
    $region8: #{tpu_custom_call.1} parent=1 // pred_region
      %s29 = ssub.s32 1024, 1024
      %30 = vsyncadd [#allocation7], %s29
      %s31 = sshll.u32 [#allocation6], 4
      %s32 = int_to_ptr.vmem [resolvable:$true] %s31
      %37 = dma.hbm_to_vmem [thread:$0]  %s1, 1024, %s32, [#allocation7], 64, 64, 4
    $region9: #{tpu_custom_call.1} parent=1 // pred_fallthru
      _
    // Predicated region
    $region10: #{tpu_custom_call.1} parent=1 // pred_check
      _
    $region11: #{tpu_custom_call.1} parent=1 // pred_check_branch
      %39 = sbr.rel (0) target = $region13
    $region12: #{tpu_custom_call.1} parent=1 // pred_region
      _
    $region13: #{tpu_custom_call.1} parent=1 // pred_fallthru
      _
    // Predicated region
    $region14: #{tpu_custom_call.1} parent=1 // pred_check
      _
    $region15: #{tpu_custom_call.1} parent=1 // pred_check_branch
      %41 = sbr.rel (0) target = $region17
    $region16: #{tpu_custom_call.1} parent=1 // pred_region
      %s43 = ssub.s32 1024, 1024
      %44 = vsyncadd [#allocation7], %s43
      %s45 = sshll.u32 [#allocation8], 4
      %s46 = int_to_ptr.vmem [resolvable:$true] %s45
      %51 = dma.hbm_to_vmem [thread:$0]  %s3, 1024, %s46, [#allocation7], 64, 64, 4
    $region17: #{tpu_custom_call.1} parent=1 // pred_fallthru
      _
    // Predicated region
    $region18: #{tpu_custom_call.1} parent=1 // pred_check
      _
    $region19: #{tpu_custom_call.1} parent=1 // pred_check_branch
      %53 = sbr.rel (0) target = $region21
    $region20: #{tpu_custom_call.1} parent=1 // pred_region
      _
    $region21: #{tpu_custom_call.1} parent=1 // pred_fallthru
      _
    // Predicated region
    $region22: #{tpu_custom_call.1} parent=1 // pred_check
      _
    $region23: #{tpu_custom_call.1} parent=1 // pred_check_branch
      %55 = sbr.rel (0) target = $region25
    $region24: #{tpu_custom_call.1} parent=1 // pred_region
      %s57 = ssub.s32 1024, 1024
      %58 = vsyncadd [#allocation10], %s57
      %s59 = sshll.u32 [#allocation9], 4
      %s60 = int_to_ptr.vmem [resolvable:$true] %s59
      %65 = dma.hbm_to_vmem [thread:$0]  %s5, 1024, %s60, [#allocation10], 64, 64, 4
    $region25: #{tpu_custom_call.1} parent=1 // pred_fallthru
      _
    // Predicated region
    $region26: #{tpu_custom_call.1} parent=1 // pred_check
      _
    $region27: #{tpu_custom_call.1} parent=1 // pred_check_branch
      %67 = sbr.rel (0) target = $region29
    $region28: #{tpu_custom_call.1} parent=1 // pred_region
      _
    $region29: #{tpu_custom_call.1} parent=1 // pred_fallthru
      _
    // Predicated region
    $region30: #{tpu_custom_call.1} parent=1 // pred_check
      _
    $region31: #{tpu_custom_call.1} parent=1 // pred_check_branch
      %69 = sbr.rel (0) target = $region33
    $region32: #{tpu_custom_call.1} parent=1 // pred_region
      %70 = dma.done [#allocation4], 64
    $region33: #{tpu_custom_call.1} parent=1 // pred_fallthru
      _
    // Predicated region
    $region34: #{tpu_custom_call.1} parent=1 // pred_check
      _
    $region35: #{tpu_custom_call.1} parent=1 // pred_check_branch
      %72 = sbr.rel (0) target = $region37
    $region36: #{tpu_custom_call.1} parent=1 // pred_region
      %73 = dma.done [#allocation7], 1024
    $region37: #{tpu_custom_call.1} parent=1 // pred_fallthru
      _
    // Predicated region
    $region38: #{tpu_custom_call.1} parent=1 // pred_check
      _
    $region39: #{tpu_custom_call.1} parent=1 // pred_check_branch
      %75 = sbr.rel (0) target = $region41
    $region40: #{tpu_custom_call.1} parent=1 // pred_region
      %76 = dma.done [#allocation7], 1024
    $region41: #{tpu_custom_call.1} parent=1 // pred_fallthru
      _
    // Predicated region
    $region42: #{tpu_custom_call.1} parent=1 // pred_check
      _
    $region43: #{tpu_custom_call.1} parent=1 // pred_check_branch
      %78 = sbr.rel (0) target = $region45
    $region44: #{tpu_custom_call.1} parent=1 // pred_region
      %79 = dma.done [#allocation10], 1024
    $region45: #{tpu_custom_call.1} parent=1 // pred_fallthru
      _
    %p81 = scmp.eq.s32.totalorder 0, 0
    // Predicated region
    $region46: #{tpu_custom_call.1} parent=1 // pred_check
      %p82 = pneg %p81
    $region47: #{tpu_custom_call.1} parent=1 // pred_check_branch
      %84 = sbr.rel (%p82) target = $region49
    $region48: #{tpu_custom_call.1} parent=1 // pred_region
      %v85 = vld [vmem:[%s2] sm:$0x1]
      %v87 = vlaneseq
      %v88 = vshrl.u32 %v87, 7
      %v89 = vsub.s32 0, %v88
      %v90 = vrot.slane %v85, %v89
      %92 = vst [vmem:[#allocation2] sm:$0xff] %v90
    $region49: #{tpu_custom_call.1} parent=1 // pred_fallthru
      _
    %v93 = vld [vmem:[#allocation2] sm:$0xff]
    %v94 = vld [vmem:[#allocation3] sm:$0xf]
    %v95 = vld [vmem:[#allocation6] sm:$0xf]
    %v96 = vld [vmem:[#allocation6 + $0x4] sm:$0xf]
    %v97 = vld [vmem:[#allocation6 + $0x8] sm:$0xf]
    %v98 = vld [vmem:[#allocation6 + $0xc] sm:$0xf]
    %v99 = vld [vmem:[#allocation6 + $0x10] sm:$0xf]
    %v100 = vld [vmem:[#allocation6 + $0x14] sm:$0xf]
    %v101 = vld [vmem:[#allocation6 + $0x18] sm:$0xf]
    %v102 = vld [vmem:[#allocation6 + $0x1c] sm:$0xf]
    %v103 = vld [vmem:[#allocation6 + $0x20] sm:$0xf]
    %v104 = vld [vmem:[#allocation6 + $0x24] sm:$0xf]
    %v105 = vld [vmem:[#allocation6 + $0x28] sm:$0xf]
    %v106 = vld [vmem:[#allocation6 + $0x2c] sm:$0xf]
    %v107 = vld [vmem:[#allocation6 + $0x30] sm:$0xf]
    %v108 = vld [vmem:[#allocation6 + $0x34] sm:$0xf]
    %v109 = vld [vmem:[#allocation6 + $0x38] sm:$0xf]
    %v110 = vld [vmem:[#allocation6 + $0x3c] sm:$0xf]
    %v127 = vunpack.c.l.b16 %v95
    %v128 = vunpack.c.l.b16 %v96
    %v129 = vunpack.c.l.b16 %v97
    %v130 = vunpack.c.l.b16 %v98
    %v131 = vunpack.c.l.b16 %v99
    %v132 = vunpack.c.l.b16 %v100
    %v133 = vunpack.c.l.b16 %v101
    %v134 = vunpack.c.l.b16 %v102
    %v135 = vunpack.c.l.b16 %v103
    %v136 = vunpack.c.l.b16 %v104
    %v137 = vunpack.c.l.b16 %v105
    %v138 = vunpack.c.l.b16 %v106
    %v139 = vunpack.c.l.b16 %v107
    %v140 = vunpack.c.l.b16 %v108
    %v141 = vunpack.c.l.b16 %v109
    %v142 = vunpack.c.l.b16 %v110
    %v143 = vpack.c.b16 %v128, %v127
    %v144 = vpack.c.b16 %v130, %v129
    %v145 = vpack.c.b16 %v132, %v131
    %v146 = vpack.c.b16 %v134, %v133
    %v147 = vpack.c.b16 %v136, %v135
    %v148 = vpack.c.b16 %v138, %v137
    %v149 = vpack.c.b16 %v140, %v139
    %v150 = vpack.c.b16 %v142, %v141
    %159 = vmatprep.subr.bf16.mxu0 0
    %160 = vmatpush1.bf16.msra.mxu0 %v150
    %161 = vmatprep.subr.bf16.mxu0 0
    %162 = vmatpush1.bf16.msra.mxu0 %v149
    %163 = vmatprep.subr.bf16.mxu0 0
    %164 = vmatpush1.bf16.msra.mxu0 %v148
    %165 = vmatprep.subr.bf16.mxu0 0
    %166 = vmatpush1.bf16.msra.mxu0 %v147
    %167 = vmatprep.subr.bf16.mxu0 0
    %168 = vmatpush1.bf16.msra.mxu0 %v146
    %169 = vmatprep.subr.bf16.mxu0 0
    %170 = vmatpush1.bf16.msra.mxu0 %v145
    %171 = vmatprep.subr.bf16.mxu0 0
    %172 = vmatpush1.bf16.msra.mxu0 %v144
    %173 = vmatprep.subr.bf16.mxu0 0
    %174 = vmatpush1.bf16.msra.mxu0 %v143
    %175 = vmatprep.subr.bf16.mxu0 0
    %176 = vmatpush2.bf16.msra.mxu0 0
    %177 = vmatprep.subr.bf16.mxu0 0
    %178 = vmatpush2.bf16.msra.mxu0 0
    %179 = vmatprep.subr.bf16.mxu0 0
    %180 = vmatpush2.bf16.msra.mxu0 0
    %181 = vmatprep.subr.bf16.mxu0 0
    %182 = vmatpush2.bf16.msra.mxu0 0
    %183 = vmatprep.subr.bf16.mxu0 0
    %184 = vmatpush2.bf16.msra.mxu0 0
    %185 = vmatprep.subr.bf16.mxu0 0
    %186 = vmatpush2.bf16.msra.mxu0 0
    %187 = vmatprep.subr.bf16.mxu0 0
    %188 = vmatpush2.bf16.msra.mxu0 0
    %189 = vmatprep.subr.bf16.mxu0 0
    %190 = vmatpush2.bf16.msra.mxu0 0
    %191 = vmatprep.mubr.bf16.mxu0 0
    %192 = vmatmul.mubr.bf16.gmra.mxu0 %v94
    %v193 = vpop.f32.mrf.mxu0
    %v194 = vadd.f32 0.0, %v193
    %v195 = vpop.f32.mrf.mxu0
    %v196 = vpop.f32.mrf.mxu0
    %v197 = vpop.f32.mrf.mxu0
    %198 = vdwg.mxu0
    %v199 = vadd.f32 %v93, %v194
    %200 = vst [vmem:[#allocation2] sm:$0xff] %v199
    // Predicated region
    $region50: #{tpu_custom_call.1} parent=1 // pred_check
      %p201 = pneg %p81
    $region51: #{tpu_custom_call.1} parent=1 // pred_check_branch
      %203 = sbr.rel (%p201) target = $region53
    $region52: #{tpu_custom_call.1} parent=1 // pred_region
      %v204 = vld [vmem:[#allocation2] sm:$0xff]
      %v205 = vmul.f32 %v204, 0.2
      %v206 = vmax.f32 %v204, %v205
      %v207 = vld [vmem:[#allocation8] sm:$0xf]
      %v208 = vld [vmem:[#allocation8 + $0x4] sm:$0xf]
      %v209 = vld [vmem:[#allocation8 + $0x8] sm:$0xf]
      %v210 = vld [vmem:[#allocation8 + $0xc] sm:$0xf]
      %v211 = vld [vmem:[#allocation8 + $0x10] sm:$0xf]
      %v212 = vld [vmem:[#allocation8 + $0x14] sm:$0xf]
      %v213 = vld [vmem:[#allocation8 + $0x18] sm:$0xf]
      %v214 = vld [vmem:[#allocation8 + $0x1c] sm:$0xf]
      %v215 = vld [vmem:[#allocation8 + $0x20] sm:$0xf]
      %v216 = vld [vmem:[#allocation8 + $0x24] sm:$0xf]
      %v217 = vld [vmem:[#allocation8 + $0x28] sm:$0xf]
      %v218 = vld [vmem:[#allocation8 + $0x2c] sm:$0xf]
      %v219 = vld [vmem:[#allocation8 + $0x30] sm:$0xf]
      %v220 = vld [vmem:[#allocation8 + $0x34] sm:$0xf]
      %v221 = vld [vmem:[#allocation8 + $0x38] sm:$0xf]
      %v222 = vld [vmem:[#allocation8 + $0x3c] sm:$0xf]
      %v223 = vld [vmem:[%s4] sm:$0x1]
      %v224 = vlaneseq
      %v225 = vshrl.u32 %v224, 7
      %vm226 = vcmp.lt.s32.totalorder %v225, 6
      %v227 = vsel %vm226, 1, 0
      %v228 = vcvt.s32.f32 %v227
      %v229 = vmul.f32 %v206, %v228
      %v230 = vrot.slane %v229, 4
      %v231 = vadd.f32 %v229, %v230
      %v232 = vrot.slane %v231, 2
      %v233 = vadd.f32 %v231, %v232
      %v234 = vrot.slane %v233, 1
      %v235 = vadd.f32 %v233, %v234
      %v236 = vmul.f32 %v235, 0.16666667
      %v237 = vsub.f32 %v206, %v236
      %v238 = vmul.f32 %v237, %v237
      %v239 = vmul.f32 %v238, %v228
      %v240 = vrot.slane %v239, 4
      %v241 = vadd.f32 %v239, %v240
      %v242 = vrot.slane %v241, 2
      %v243 = vadd.f32 %v241, %v242
      %v244 = vrot.slane %v243, 1
      %v245 = vadd.f32 %v243, %v244
      %v246 = vmul.f32 %v245, 0.16666667
      %v247 = vadd.f32 %v246, 1e-05
      %v248 = vrsqrt.pop %v247
      %v249 = vmul.f32 %v237, %v248
      %v250 = vpack.c.bf16 %v249, %v249
      %v252 = vlaneseq
      %v253 = vshrl.u32 %v252, 7
      %v254 = vsub.s32 0, %v253
      %v255 = vrot.slane %v223, %v254
      %v273 = vunpack.c.l.b16 %v207
      %v274 = vunpack.c.l.b16 %v208
      %v275 = vunpack.c.l.b16 %v209
      %v276 = vunpack.c.l.b16 %v210
      %v277 = vunpack.c.l.b16 %v211
      %v278 = vunpack.c.l.b16 %v212
      %v279 = vunpack.c.l.b16 %v213
      %v280 = vunpack.c.l.b16 %v214
      %v281 = vunpack.c.l.b16 %v215
      %v282 = vunpack.c.l.b16 %v216
      %v283 = vunpack.c.l.b16 %v217
      %v284 = vunpack.c.l.b16 %v218
      %v285 = vunpack.c.l.b16 %v219
      %v286 = vunpack.c.l.b16 %v220
      %v287 = vunpack.c.l.b16 %v221
      %v288 = vunpack.c.l.b16 %v222
      %v289 = vpack.c.b16 %v274, %v273
      %v290 = vpack.c.b16 %v276, %v275
      %v291 = vpack.c.b16 %v278, %v277
      %v292 = vpack.c.b16 %v280, %v279
      %v293 = vpack.c.b16 %v282, %v281
      %v294 = vpack.c.b16 %v284, %v283
      %v295 = vpack.c.b16 %v286, %v285
      %v296 = vpack.c.b16 %v288, %v287
      %305 = vmatprep.subr.bf16.mxu0 0
      %306 = vmatpush1.bf16.msra.mxu0 %v296
      %307 = vmatprep.subr.bf16.mxu0 0
      %308 = vmatpush1.bf16.msra.mxu0 %v295
      %309 = vmatprep.subr.bf16.mxu0 0
      %310 = vmatpush1.bf16.msra.mxu0 %v294
      %311 = vmatprep.subr.bf16.mxu0 0
      %312 = vmatpush1.bf16.msra.mxu0 %v293
      %313 = vmatprep.subr.bf16.mxu0 0
      %314 = vmatpush1.bf16.msra.mxu0 %v292
      %315 = vmatprep.subr.bf16.mxu0 0
      %316 = vmatpush1.bf16.msra.mxu0 %v291
      %317 = vmatprep.subr.bf16.mxu0 0
      %318 = vmatpush1.bf16.msra.mxu0 %v290
      %319 = vmatprep.subr.bf16.mxu0 0
      %320 = vmatpush1.bf16.msra.mxu0 %v289
      %321 = vmatprep.subr.bf16.mxu0 0
      %322 = vmatpush2.bf16.msra.mxu0 0
      %323 = vmatprep.subr.bf16.mxu0 0
      %324 = vmatpush2.bf16.msra.mxu0 0
      %325 = vmatprep.subr.bf16.mxu0 0
      %326 = vmatpush2.bf16.msra.mxu0 0
      %327 = vmatprep.subr.bf16.mxu0 0
      %328 = vmatpush2.bf16.msra.mxu0 0
      %329 = vmatprep.subr.bf16.mxu0 0
      %330 = vmatpush2.bf16.msra.mxu0 0
      %331 = vmatprep.subr.bf16.mxu0 0
      %332 = vmatpush2.bf16.msra.mxu0 0
      %333 = vmatprep.subr.bf16.mxu0 0
      %334 = vmatpush2.bf16.msra.mxu0 0
      %335 = vmatprep.subr.bf16.mxu0 0
      %336 = vmatpush2.bf16.msra.mxu0 0
      %337 = vmatprep.mubr.bf16.mxu0 0
      %338 = vmatmul.mubr.bf16.gmra.mxu0 %v250
      %v339 = vpop.f32.mrf.mxu0
      %v340 = vadd.f32 %v255, %v339
      %v341 = vpop.f32.mrf.mxu0
      %v342 = vpop.f32.mrf.mxu0
      %v343 = vpop.f32.mrf.mxu0
      %344 = vdwg.mxu0
      %v345 = vmul.f32 %v340, 0.2
      %v346 = vmax.f32 %v340, %v345
      %v347 = vmul.f32 %v346, %v228
      %v348 = vrot.slane %v347, 4
      %v349 = vadd.f32 %v347, %v348
      %v350 = vrot.slane %v349, 2
      %v351 = vadd.f32 %v349, %v350
      %v352 = vrot.slane %v351, 1
      %v353 = vadd.f32 %v351, %v352
      %v354 = vmul.f32 %v353, 0.16666667
      %v355 = vsub.f32 %v346, %v354
      %v356 = vmul.f32 %v355, %v355
      %v357 = vmul.f32 %v356, %v228
      %v358 = vrot.slane %v357, 4
      %v359 = vadd.f32 %v357, %v358
      %v360 = vrot.slane %v359, 2
      %v361 = vadd.f32 %v359, %v360
      %v362 = vrot.slane %v361, 1
      %v363 = vadd.f32 %v361, %v362
      %v364 = vmul.f32 %v363, 0.16666667
      %v365 = vadd.f32 %v364, 1e-05
      %v366 = vrsqrt.pop %v365
      %v367 = vmul.f32 %v355, %v366
      %v368 = vpack.c.bf16 %v367, %v367
      %369 = vmatprep.subr.bf16.mxu0 0
      %370 = vmatpush1.bf16.msra.mxu0 %v296
      %371 = vmatprep.subr.bf16.mxu0 0
      %372 = vmatpush1.bf16.msra.mxu0 %v295
      %373 = vmatprep.subr.bf16.mxu0 0
      %374 = vmatpush1.bf16.msra.mxu0 %v294
      %375 = vmatprep.subr.bf16.mxu0 0
      %376 = vmatpush1.bf16.msra.mxu0 %v293
      %377 = vmatprep.subr.bf16.mxu0 0
      %378 = vmatpush1.bf16.msra.mxu0 %v292
      %379 = vmatprep.subr.bf16.mxu0 0
      %380 = vmatpush1.bf16.msra.mxu0 %v291
      %381 = vmatprep.subr.bf16.mxu0 0
      %382 = vmatpush1.bf16.msra.mxu0 %v290
      %383 = vmatprep.subr.bf16.mxu0 0
      %384 = vmatpush1.bf16.msra.mxu0 %v289
      %385 = vmatprep.subr.bf16.mxu0 0
      %386 = vmatpush2.bf16.msra.mxu0 0
      %387 = vmatprep.subr.bf16.mxu0 0
      %388 = vmatpush2.bf16.msra.mxu0 0
      %389 = vmatprep.subr.bf16.mxu0 0
      %390 = vmatpush2.bf16.msra.mxu0 0
      %391 = vmatprep.subr.bf16.mxu0 0
      %392 = vmatpush2.bf16.msra.mxu0 0
      %393 = vmatprep.subr.bf16.mxu0 0
      %394 = vmatpush2.bf16.msra.mxu0 0
      %395 = vmatprep.subr.bf16.mxu0 0
      %396 = vmatpush2.bf16.msra.mxu0 0
      %397 = vmatprep.subr.bf16.mxu0 0
      %398 = vmatpush2.bf16.msra.mxu0 0
      %399 = vmatprep.subr.bf16.mxu0 0
      %400 = vmatpush2.bf16.msra.mxu0 0
      %401 = vmatprep.mubr.bf16.mxu0 0
      %402 = vmatmul.mubr.bf16.gmra.mxu0 %v368
      %v403 = vpop.f32.mrf.mxu0
      %v404 = vadd.f32 %v255, %v403
      %v405 = vpop.f32.mrf.mxu0
      %v406 = vpop.f32.mrf.mxu0
      %v407 = vpop.f32.mrf.mxu0
      %408 = vdwg.mxu0
      %v409 = vmul.f32 %v404, 0.2
      %v410 = vmax.f32 %v404, %v409
      %v411 = vpack.c.bf16 %v410, %v410
      %v412 = vld [vmem:[#allocation9] sm:$0xf]
      %v413 = vld [vmem:[#allocation9 + $0x4] sm:$0xf]
      %v414 = vld [vmem:[#allocation9 + $0x8] sm:$0xf]
      %v415 = vld [vmem:[#allocation9 + $0xc] sm:$0xf]
      %v416 = vld [vmem:[#allocation9 + $0x10] sm:$0xf]
      %v417 = vld [vmem:[#allocation9 + $0x14] sm:$0xf]
      %v418 = vld [vmem:[#allocation9 + $0x18] sm:$0xf]
      %v419 = vld [vmem:[#allocation9 + $0x1c] sm:$0xf]
      %v420 = vld [vmem:[#allocation9 + $0x20] sm:$0xf]
      %v421 = vld [vmem:[#allocation9 + $0x24] sm:$0xf]
      %v422 = vld [vmem:[#allocation9 + $0x28] sm:$0xf]
      %v423 = vld [vmem:[#allocation9 + $0x2c] sm:$0xf]
      %v424 = vld [vmem:[#allocation9 + $0x30] sm:$0xf]
      %v425 = vld [vmem:[#allocation9 + $0x34] sm:$0xf]
      %v426 = vld [vmem:[#allocation9 + $0x38] sm:$0xf]
      %v427 = vld [vmem:[#allocation9 + $0x3c] sm:$0xf]
      %v428 = vld [vmem:[%s6] sm:$0x1]
      %v430 = vlaneseq
      %v431 = vshrl.u32 %v430, 7
      %v432 = vsub.s32 0, %v431
      %v433 = vrot.slane %v428, %v432
      %v451 = vunpack.c.l.b16 %v412
      %v452 = vunpack.c.l.b16 %v413
      %v453 = vunpack.c.l.b16 %v414
      %v454 = vunpack.c.l.b16 %v415
      %v455 = vunpack.c.l.b16 %v416
      %v456 = vunpack.c.l.b16 %v417
      %v457 = vunpack.c.l.b16 %v418
      %v458 = vunpack.c.l.b16 %v419
      %v459 = vunpack.c.l.b16 %v420
      %v460 = vunpack.c.l.b16 %v421
      %v461 = vunpack.c.l.b16 %v422
      %v462 = vunpack.c.l.b16 %v423
      %v463 = vunpack.c.l.b16 %v424
      %v464 = vunpack.c.l.b16 %v425
      %v465 = vunpack.c.l.b16 %v426
      %v466 = vunpack.c.l.b16 %v427
      %v467 = vpack.c.b16 %v452, %v451
      %v468 = vpack.c.b16 %v454, %v453
      %v469 = vpack.c.b16 %v456, %v455
      %v470 = vpack.c.b16 %v458, %v457
      %v471 = vpack.c.b16 %v460, %v459
      %v472 = vpack.c.b16 %v462, %v461
      %v473 = vpack.c.b16 %v464, %v463
      %v474 = vpack.c.b16 %v466, %v465
      %483 = vmatprep.subr.bf16.mxu0 0
      %484 = vmatpush1.bf16.msra.mxu0 %v474
      %485 = vmatprep.subr.bf16.mxu0 0
      %486 = vmatpush1.bf16.msra.mxu0 %v473
      %487 = vmatprep.subr.bf16.mxu0 0
      %488 = vmatpush1.bf16.msra.mxu0 %v472
      %489 = vmatprep.subr.bf16.mxu0 0
      %490 = vmatpush1.bf16.msra.mxu0 %v471
      %491 = vmatprep.subr.bf16.mxu0 0
      %492 = vmatpush1.bf16.msra.mxu0 %v470
      %493 = vmatprep.subr.bf16.mxu0 0
      %494 = vmatpush1.bf16.msra.mxu0 %v469
      %495 = vmatprep.subr.bf16.mxu0 0
      %496 = vmatpush1.bf16.msra.mxu0 %v468
      %497 = vmatprep.subr.bf16.mxu0 0
      %498 = vmatpush1.bf16.msra.mxu0 %v467
      %499 = vmatprep.subr.bf16.mxu0 0
      %500 = vmatpush2.bf16.msra.mxu0 0
      %501 = vmatprep.subr.bf16.mxu0 0
      %502 = vmatpush2.bf16.msra.mxu0 0
      %503 = vmatprep.subr.bf16.mxu0 0
      %504 = vmatpush2.bf16.msra.mxu0 0
      %505 = vmatprep.subr.bf16.mxu0 0
      %506 = vmatpush2.bf16.msra.mxu0 0
      %507 = vmatprep.subr.bf16.mxu0 0
      %508 = vmatpush2.bf16.msra.mxu0 0
      %509 = vmatprep.subr.bf16.mxu0 0
      %510 = vmatpush2.bf16.msra.mxu0 0
      %511 = vmatprep.subr.bf16.mxu0 0
      %512 = vmatpush2.bf16.msra.mxu0 0
      %513 = vmatprep.subr.bf16.mxu0 0
      %514 = vmatpush2.bf16.msra.mxu0 0
      %515 = vmatprep.mubr.bf16.mxu0 0
      %516 = vmatmul.mubr.bf16.gmra.mxu0 %v411
      %v517 = vpop.f32.mrf.mxu0
      %v518 = vadd.f32 %v433, %v517
      %v519 = vpop.f32.mrf.mxu0
      %v520 = vpop.f32.mrf.mxu0
      %v521 = vpop.f32.mrf.mxu0
      %522 = vdwg.mxu0
      %v523 = vmul.f32 %v518, 0.2
      %v524 = vmax.f32 %v518, %v523
      %525 = vst [vmem:[#allocation11] sm:$0xff] %v524
    $region53: #{tpu_custom_call.1} parent=1 // pred_fallthru
      _
    // Predicated region
    $region54: #{tpu_custom_call.1} parent=1 // pred_check
      _
    $region55: #{tpu_custom_call.1} parent=1 // pred_check_branch
      %527 = sbr.rel (0) target = $region57
    $region56: #{tpu_custom_call.1} parent=1 // pred_region
      %s529 = ssub.s32 128, 128
      %530 = vsyncadd [#allocation5], %s529
      %s532 = sshll.u32 [#allocation11], 4
      %s533 = int_to_ptr.vmem [resolvable:$true] %s532
      %535 = dma.vmem_to_hbm [thread:$0]  %s533, 128, %s7, [#allocation5]
    $region57: #{tpu_custom_call.1} parent=1 // pred_fallthru
      _
    // Predicated region
    $region58: #{tpu_custom_call.1} parent=1 // pred_check
      _
    $region59: #{tpu_custom_call.1} parent=1 // pred_check_branch
      %537 = sbr.rel (0) target = $region61
    $region60: #{tpu_custom_call.1} parent=1 // pred_region
      %538 = dma.done [#allocation5], 128
    $region61: #{tpu_custom_call.1} parent=1 // pred_fallthru
      _
    %539 = vsyncpa [#allocation4], 1
    %540 = vsyncpa [#allocation7], 1
    %541 = vsyncpa [#allocation10], 1
    %542 = vsyncpa [#allocation5], 1

</llo_original>
